<compile_context>
chip_gen: v5e
topology: v5e:2x2
jax: 0.10.0
libtpu: 0.0.40
codegen_flags: <defaults>
</compile_context>

<pallas_src>
import jax
import jax.numpy as jnp
from jax.experimental import pallas as pl
from jax.experimental.pallas import tpu as pltpu

LN_EPS = 1e-5  # PyTorch nn.LayerNorm default


def pre_layernorm_kernel(x_ref, gamma_ref, beta_ref, w_ref, b_ref, o_ref, y_ref):
    # x_ref:      (bm, D)   input rows (any float dtype)
    # gamma/beta: (1, D)    f32 (pre-cast in wrapper)
    # w_ref:      (D, tn)   bf16 (pre-cast / pre-transposed)
    # b_ref:      (1, tn)   f32
    # o_ref:      (bm, tn)
    # y_ref:      (bm, D)   bf16 VMEM scratch holding the normalized row tile

    # LayerNorm only on the first column tile of each row tile; reuse afterwards.
    @pl.when(pl.program_id(1) == 0)
    def _():
        x = x_ref[...].astype(jnp.float32)
        inv_d = 1.0 / x.shape[-1]
        mean = jnp.sum(x, axis=-1, keepdims=True) * inv_d
        xc = x - mean
        var = jnp.sum(xc * xc, axis=-1, keepdims=True) * inv_d  # two-pass (PyTorch-exact)
        x_hat = xc * jax.lax.rsqrt(var + LN_EPS)
        y_ref[...] = (x_hat * gamma_ref[...] + beta_ref[...]).astype(y_ref.dtype)

    # fn = Linear(dim, dim): y @ W^T + b  (bf16 MXU operands, f32 accumulation)
    out = jnp.dot(y_ref[...], w_ref[...], preferred_element_type=jnp.float32) + b_ref[...]
    o_ref[...] = out.astype(o_ref.dtype)


def _vmem_capacity_bytes():
    """Per-core VMEM capacity; conservative fallback if query unavailable."""
    try:
        info = pltpu.get_tpu_info()
        cap = getattr(info, "vmem_capacity_bytes", None)
        if cap:
            return int(cap)
    except Exception:
        pass
    return 64 * 1024 * 1024  # v7x per-TC (smallest of current generations)


def _pick_tn(D, block_cols):
    """Largest divisor of D that is a multiple of 128 and <= block_cols."""
    if D <= block_cols or D % 128 != 0:
        return D
    for t in range(min(block_cols, D) // 128 * 128, 127, -128):
        if D % t == 0:
            return t
    return D  # unreachable for D % 128 == 0 (128 always divides D)


def _fit_bm(bm, rows, D, tn, x_itemsize, out_itemsize, budget_bytes):
    """Clamp row tile so double-buffered tiles + scratch fit the VMEM budget."""
    # Per-row bytes: x (2 bufs), bf16 scratch (1 buf), out (2 bufs).
    per_row = 2 * D * x_itemsize + D * 2 + 2 * tn * out_itemsize
    # Fixed bytes: W tile + bias (2 bufs), gamma/beta (2 bufs).
    fixed = 2 * D * tn * 2 + 2 * tn * 4 + 2 * 2 * D * 4
    max_bm = max(8, (budget_bytes - fixed) // per_row)
    bm = min(bm, max_bm)
    if bm >= rows:
        return rows  # full extent (no (8) alignment needed when equal to array dim)
    return max(8, int(bm) // 8 * 8)


def pre_layernorm(x, gamma, beta, w_t, b, *, block_rows=None, block_cols=512,
                  out_dtype=None):
    """x: [B, S, D]; gamma/beta/b: [D]; w_t: [D, D] = W^T (ideally pre-cast bf16)."""
    B, S, D = x.shape
    rows = B * S
    x2 = x.reshape(rows, D)
    out_dtype = out_dtype or x.dtype

    # Cast parameters ONCE in the wrapper (no per-grid-step VPU re-cast).
    gamma2 = gamma.reshape(1, D).astype(jnp.float32)
    beta2 = beta.reshape(1, D).astype(jnp.float32)
    b2 = b.reshape(1, D).astype(jnp.float32)
    w_bf16 = w_t if w_t.dtype == jnp.bfloat16 else w_t.astype(jnp.bfloat16)

    vmem_cap = _vmem_capacity_bytes()
    if block_rows is None:
        # 128 MiB VMEM chips (v5e/v6e): big row tile pushes W-stream intensity
        # past the HBM/MXU crossover. 64 MiB (v7x): 384 is already MXU-bound.
        block_rows = 768 if vmem_cap >= 100 * 1024 * 1024 else 384

    tn = _pick_tn(D, block_cols)
    bm = _fit_bm(block_rows, rows, D, tn,
                 x2.dtype.itemsize, jnp.dtype(out_dtype).itemsize,
                 budget_bytes=int(vmem_cap * 0.6))

    grid = (pl.cdiv(rows, bm), D // tn)

    # Scoped-VMEM request: actual need + headroom, capped below physical capacity.
    per_row = 2 * D * x2.dtype.itemsize + D * 2 + 2 * tn * jnp.dtype(out_dtype).itemsize
    fixed = 2 * D * tn * 2 + 2 * tn * 4 + 2 * 2 * D * 4
    need = fixed + bm * per_row + (2 << 20)
    vmem_limit = int(min(max(2 * need, 16 << 20), int(vmem_cap * 0.9)))

    out = pl.pallas_call(
        pre_layernorm_kernel,
        out_shape=jax.ShapeDtypeStruct((rows, D), out_dtype),
        grid=grid,
        in_specs=[
            pl.BlockSpec((bm, D), lambda i, j: (i, 0)),   # x rows (constant over j -> no re-DMA)
            pl.BlockSpec((1, D), lambda i, j: (0, 0)),    # gamma (resident)
            pl.BlockSpec((1, D), lambda i, j: (0, 0)),    # beta (resident)
            pl.BlockSpec((D, tn), lambda i, j: (0, j)),   # W^T column tile (bf16)
            pl.BlockSpec((1, tn), lambda i, j: (0, j)),   # bias column tile
        ],
        out_specs=pl.BlockSpec((bm, tn), lambda i, j: (i, j)),
        scratch_shapes=[pltpu.VMEM((bm, D), jnp.bfloat16)],  # normalized row tile
        compiler_params=pltpu.CompilerParams(
            # Column axis is "arbitrary": the LN scratch carries state across j.
            dimension_semantics=("parallel", "arbitrary"),
            vmem_limit_bytes=vmem_limit,
        ),
    )(x2, gamma2, beta2, w_bf16, b2)

    return out.reshape(B, S, D)


def reference(x, gamma, beta, w_t, b):
    # Pure-f32 semantics of PreLayerNorm(dim, fn=Linear(dim, dim)).
    xf = x.astype(jnp.float32)
    mean = jnp.mean(xf, axis=-1, keepdims=True)
    var = jnp.mean((xf - mean) ** 2, axis=-1, keepdims=True)
    y = (xf - mean) / jnp.sqrt(var + LN_EPS) * gamma + beta
    return (y @ w_t + b).astype(x.dtype)


if __name__ == "__main__":
    # Small demo shapes; D a multiple of 128 so stores are lane-dense.
    # Tiles forced small (128) so the demo exercises the 2-D grid and the
    # LN-scratch reuse across column tiles.
    B, S, D = 2, 192, 256
    key = jax.random.PRNGKey(0)
    kx, kg, kb, kw, kbb = jax.random.split(key, 5)

    x = jax.random.normal(kx, (B, S, D), dtype=jnp.float32)
    # Deterministic parameter init (synthetic; not loaded from a checkpoint).
    gamma = 1.0 + 0.1 * jax.random.normal(kg, (D,), dtype=jnp.float32)
    beta = 0.1 * jax.random.normal(kb, (D,), dtype=jnp.float32)
    w = jax.random.normal(kw, (D, D), dtype=jnp.float32) / jnp.sqrt(D)  # Linear weight [out, in]
    b = 0.1 * jax.random.normal(kbb, (D,), dtype=jnp.float32)
    w_t_bf16 = w.T.astype(jnp.bfloat16)  # pre-transpose + cast ONCE (stored bf16)

    out = pre_layernorm(x, gamma, beta, w_t_bf16, b, block_rows=128, block_cols=128)
    out = jax.block_until_ready(out)

    ref = reference(x, gamma, beta, w.T, b)
    assert out.shape == (B, S, D)
    # bf16 MXU operands (f32 accumulation) vs. f32 reference: tolerance ~1e-2 level.
    assert jnp.allclose(out, ref, atol=5e-2, rtol=5e-2), "mismatch vs reference"
    print("KERNEL_OK")
</pallas_src>

<mosaic_0001>
module attributes {stable_mosaic.version = 11 : i64} {
  func.func @pre_layernorm_kernel(%arg0: i32, %arg1: i32, %arg2: memref<128x256xf32, #tpu.memory_space<vmem>>, %arg3: memref<1x256xf32, #tpu.memory_space<vmem>>, %arg4: memref<1x256xf32, #tpu.memory_space<vmem>>, %arg5: memref<256x128xbf16, #tpu.memory_space<vmem>>, %arg6: memref<1x128xf32, #tpu.memory_space<vmem>>, %arg7: memref<128x128xf32, #tpu.memory_space<vmem>>, %arg8: memref<128x256xbf16, #tpu.memory_space<vmem>>) attributes {dimension_semantics = [#tpu.dimension_semantics<parallel>, #tpu.dimension_semantics<arbitrary>], iteration_bounds = array<i64: 3, 2>, scalar_prefetch = 0 : i64, scratch_operands = 1 : i64, tpu.core_type = #tpu.core_type<tc>, window_params = [{transform_indices = @transform_0, window_bounds = array<i64: 128, 256>}, {pipeline_mode = #tpu.pipeline_mode<synchronous>, transform_indices = @transform_1, window_bounds = array<i64: 1, 256>}, {pipeline_mode = #tpu.pipeline_mode<synchronous>, transform_indices = @transform_2, window_bounds = array<i64: 1, 256>}, {transform_indices = @transform_3, window_bounds = array<i64: 256, 128>}, {transform_indices = @transform_4, window_bounds = array<i64: 1, 128>}, {transform_indices = @transform_5, window_bounds = array<i64: 128, 128>}]} {
    %c0_i32 = arith.constant 0 : i32
    %0 = arith.cmpi eq, %arg1, %c0_i32 : i32
    %1 = arith.extui %0 : i1 to i32
    %c0_i32_0 = arith.constant 0 : i32
    %2 = arith.cmpi ne, %1, %c0_i32_0 : i32
    scf.if %2 {
      %c0_8 = arith.constant 0 : index
      %c0_9 = arith.constant 0 : index
      %10 = vector.load %arg2[%c0_8, %c0_9] : memref<128x256xf32, #tpu.memory_space<vmem>>, vector<128x256xf32>
      %cst_10 = arith.constant dense<0.000000e+00> : vector<128xf32>
      %11 = vector.multi_reduction <add>, %10, %cst_10 [1] : vector<128x256xf32> to vector<128xf32>
      %12 = vector.shape_cast %11 : vector<128xf32> to vector<128x1xf32>
      %cst_11 = arith.constant 3.906250e-03 : f32
      %13 = vector.broadcast %cst_11 : f32 to vector<128x1xf32>
      %14 = arith.mulf %12, %13 : vector<128x1xf32>
      %15 = vector.broadcast %14 : vector<128x1xf32> to vector<128x256xf32>
      %16 = arith.subf %10, %15 : vector<128x256xf32>
      %17 = arith.mulf %16, %16 : vector<128x256xf32>
      %cst_12 = arith.constant dense<0.000000e+00> : vector<128xf32>
      %18 = vector.multi_reduction <add>, %17, %cst_12 [1] : vector<128x256xf32> to vector<128xf32>
      %19 = vector.shape_cast %18 : vector<128xf32> to vector<128x1xf32>
      %cst_13 = arith.constant 3.906250e-03 : f32
      %20 = vector.broadcast %cst_13 : f32 to vector<128x1xf32>
      %21 = arith.mulf %19, %20 : vector<128x1xf32>
      %cst_14 = arith.constant 9.99999974E-6 : f32
      %22 = vector.broadcast %cst_14 : f32 to vector<128x1xf32>
      %23 = arith.addf %21, %22 : vector<128x1xf32>
      %24 = math.rsqrt %23 : vector<128x1xf32>
      %25 = vector.broadcast %24 : vector<128x1xf32> to vector<128x256xf32>
      %26 = arith.mulf %16, %25 : vector<128x256xf32>
      %c0_15 = arith.constant 0 : index
      %c0_16 = arith.constant 0 : index
      %27 = vector.load %arg3[%c0_15, %c0_16] : memref<1x256xf32, #tpu.memory_space<vmem>>, vector<1x256xf32>
      %28 = vector.broadcast %27 : vector<1x256xf32> to vector<128x256xf32>
      %29 = arith.mulf %26, %28 : vector<128x256xf32>
      %c0_17 = arith.constant 0 : index
      %c0_18 = arith.constant 0 : index
      %30 = vector.load %arg4[%c0_17, %c0_18] : memref<1x256xf32, #tpu.memory_space<vmem>>, vector<1x256xf32>
      %31 = vector.broadcast %30 : vector<1x256xf32> to vector<128x256xf32>
      %32 = arith.addf %29, %31 : vector<128x256xf32>
      %33 = arith.truncf %32 : vector<128x256xf32> to vector<128x256xbf16>
      %c0_19 = arith.constant 0 : index
      %c0_20 = arith.constant 0 : index
      %34 = vector.load %arg8[%c0_19, %c0_20] : memref<128x256xbf16, #tpu.memory_space<vmem>>, vector<128x256xbf16>
      tpu.vector_store %arg8[%c0_19, %c0_20], %33 {strides = array<i32>} : memref<128x256xbf16, #tpu.memory_space<vmem>>, vector<128x256xbf16>,
    } else {
    }
    %c0 = arith.constant 0 : index
    %c0_1 = arith.constant 0 : index
    %3 = vector.load %arg8[%c0, %c0_1] : memref<128x256xbf16, #tpu.memory_space<vmem>>, vector<128x256xbf16>
    %c0_2 = arith.constant 0 : index
    %c0_3 = arith.constant 0 : index
    %4 = vector.load %arg5[%c0_2, %c0_3] : memref<256x128xbf16, #tpu.memory_space<vmem>>, vector<256x128xbf16>
    %cst = arith.constant dense<0.000000e+00> : vector<128x128xf32>
    %5 = tpu.matmul %3, %4, %cst {dimension_numbers = #tpu.dot_dimension_numbers<[1], [0], [0], [1], [0, 0, 1, 1], [], []>} : vector<128x256xbf16>, vector<256x128xbf16>, vector<128x128xf32> -> vector<128x128xf32>
    %c0_4 = arith.constant 0 : index
    %c0_5 = arith.constant 0 : index
    %6 = vector.load %arg6[%c0_4, %c0_5] : memref<1x128xf32, #tpu.memory_space<vmem>>, vector<1x128xf32>
    %7 = vector.broadcast %6 : vector<1x128xf32> to vector<128x128xf32>
    %8 = arith.addf %5, %7 : vector<128x128xf32>
    %c0_6 = arith.constant 0 : index
    %c0_7 = arith.constant 0 : index
    %9 = vector.load %arg7[%c0_6, %c0_7] : memref<128x128xf32, #tpu.memory_space<vmem>>, vector<128x128xf32>
    tpu.vector_store %arg7[%c0_6, %c0_7], %8 {strides = array<i32>} : memref<128x128xf32, #tpu.memory_space<vmem>>, vector<128x128xf32>,
    return
  }
  func.func @transform_0(%arg0: i32, %arg1: i32) -> (i32, i32) {
    %c0_i32 = arith.constant 0 : i32
    %c0_i32_0 = arith.constant 0 : i32
    return %arg0, %c0_i32 : i32, i32
  }
  func.func @transform_1(%arg0: i32, %arg1: i32) -> (i32, i32) {
    %c0_i32 = arith.constant 0 : i32
    %c0_i32_0 = arith.constant 0 : i32
    %c0_i32_1 = arith.constant 0 : i32
    return %c0_i32, %c0_i32_0 : i32, i32
  }
  func.func @transform_2(%arg0: i32, %arg1: i32) -> (i32, i32) {
    %c0_i32 = arith.constant 0 : i32
    %c0_i32_0 = arith.constant 0 : i32
    %c0_i32_1 = arith.constant 0 : i32
    return %c0_i32, %c0_i32_0 : i32, i32
  }
  func.func @transform_3(%arg0: i32, %arg1: i32) -> (i32, i32) {
    %c0_i32 = arith.constant 0 : i32
    %c0_i32_0 = arith.constant 0 : i32
    return %c0_i32, %arg1 : i32, i32
  }
  func.func @transform_4(%arg0: i32, %arg1: i32) -> (i32, i32) {
    %c0_i32 = arith.constant 0 : i32
    %c0_i32_0 = arith.constant 0 : i32
    return %c0_i32, %arg1 : i32, i32
  }
  func.func @transform_5(%arg0: i32, %arg1: i32) -> (i32, i32) {
    %c0_i32 = arith.constant 0 : i32
    return %arg0, %arg1 : i32, i32
  }
}

</mosaic_0001>

<llo_original>
// kernel: tpu_custom_call.1
$region0: #{tpu_custom_call.1}
  #allocation0 [shape = 'u32[]', space=smem, size = 0x4, offset = 0x4, fixed_abs, tag = 'smem constant byte address 0x4 - core index']
  #allocation1 [shape = 'u32[72,128]{1,0:T(1,128)}', space=vmem, size = 0x9000, scoped, tag = 'internal scratch']
  #allocation2 [shape = 'bf16[128,256]{1,0:T(8,128)(2,1)}', space=vmem, size = 0x10000, scoped, tag = 'scratch operand']
  %s0 = inlined_call_operand.hbm [shape: f32[384,256], index: 0, kind: input, shape index: {}]
  %s1 = inlined_call_operand.hbm [shape: f32[1,256], index: 1, kind: input, shape index: {}]
  %s2 = inlined_call_operand.hbm [shape: f32[1,256], index: 2, kind: input, shape index: {}]
  %s3 = inlined_call_operand.hbm [shape: bf16[256,256], index: 3, kind: input, shape index: {}]
  %s4 = inlined_call_operand.vmem [shape: f32[1,256], index: 4, kind: input, shape index: {}]
  %s5 = inlined_call_operand.hbm [shape: f32[384,256], index: 5, kind: output, shape index: {}]
  %s6 = sld [smem:[#allocation0]]
  $region73: #{tpu_custom_call.1} parent=0
    _
  %s8 = ssub.s32 1, %s6
  %s9 = scalar_select 0, %s8, %s6
  $region1: #{tpu_custom_call.1} parent=0
    #allocation3 [shape = 'u8[262144]{0}', space=vmem, size = 0x40000, scoped, tag = 'input window, operand 0']
    #allocation4 [shape = 's32[2]{0}', space=sflag, size = 0x8, scoped, tag = 'scoped memory for tpu_custom_call.1']
    #allocation5 [shape = 's32[2]{0}', space=sflag, size = 0x8, scoped, tag = 'scoped memory for tpu_custom_call.1']
    #allocation6 [shape = 'u8[1024]{0}', space=vmem, size = 0x400, scoped, tag = 'input window, operand 1, single buffered']
    #allocation7 [shape = 's32[1]{0}', space=sflag, size = 0x4, scoped, tag = 'scoped memory for tpu_custom_call.1']
    #allocation8 [shape = 'u8[1024]{0}', space=vmem, size = 0x400, scoped, tag = 'input window, operand 2, single buffered']
    #allocation9 [shape = 'u8[131072]{0}', space=vmem, size = 0x20000, scoped, tag = 'input window, operand 3']
    #allocation10 [shape = 's32[2]{0}', space=sflag, size = 0x8, scoped, tag = 'scoped memory for tpu_custom_call.1']
    #allocation11 [shape = 'u8[131072]{0}', space=vmem, size = 0x20000, scoped, tag = 'output window, operand 0']
    %10 = vsyncpa [#allocation4], 0
    %s11 = scalar_lea.sflag [#allocation4], 1
    %12 = vsyncpa %s11, 0
    %13 = vsyncpa [#allocation7], 0
    %14 = vsyncpa [#allocation10], 0
    %s15 = scalar_lea.sflag [#allocation10], 1
    %16 = vsyncpa %s15, 0
    %17 = vsyncpa [#allocation5], 0
    %s18 = scalar_lea.sflag [#allocation5], 1
    %19 = vsyncpa %s18, 0
    loop: start=0, step=1, limit=8
    $region2: #{tpu_custom_call.1} parent=1 // loop_pre_header
      _
    $region3: #{tpu_custom_call.1} parent=1 // loop_header
      %s21 = sphi 0, %s25
      %p22 = scmp.ge.s32.totalorder %s21, 8
      %s28 = sphi 0, %s40
      %s29 = sphi 0, %s36
      %s30 = sphi 0, %s28
      %s31 = sphi 0, %s29
      %s32 = sphi 0, %s30
      %s33 = sphi 0, %s31
      %s43 = sphi 0, %s45
      %s46 = sphi 0, %s43
      %s47 = sphi 0, %s46
      %s63 = sphi 0, %s47
      %s67 = sphi 0, %s67
      %s69 = sphi 0, %s67
      %s70 = sphi 0, %s69
      %s84 = sphi 0, %s70
      %s88 = sphi 0, %s88
      %s90 = sphi 0, %s88
      %s91 = sphi 0, %s90
      %s105 = sphi 0, %s91
      %s111 = sphi 0, %s113
      %s114 = sphi 0, %s111
      %s115 = sphi 0, %s114
      %s131 = sphi 0, %s115
      %s137 = sphi 0, %s139
      %s140 = sphi 0, %s137
      %s141 = sphi 0, %s140
      %s157 = sphi 0, %s141
      %s165 = sphi 0, %s167
      %s168 = sphi 0, %s165
      %s169 = sphi 0, %s168
      %s185 = sphi 0, %s169
    $region4: #{tpu_custom_call.1} parent=1 // loop_header_branch
      %24 = sbr.rel (%p22) target = $region8
    $region5: #{tpu_custom_call.1} parent=1 // loop_body
      %s26 = ssub.s32 %s21, 1
      %s27 = ssub.s32 %s21, 2
      %s34 = sadd.s32 1, %s29
      %p35 = scmp.ge.s32.totalorder %s34, 2
      %s36 = scalar_select %p35, 0, %s34
      %s37 = sadd.s32 1, %s28
      %s38 = scalar_select %p35, %s37, %s28
      %p39 = scmp.ge.s32.totalorder %s38, 3
      %s40 = scalar_select %p39, 0, %s38
      %s41 = ssub.s32 %s28, %s40
      %p42 = scmp.eq.s32.totalorder %s41, 0
      %s44 = sadd.s32 %s43, 1
      %s45 = scalar_select %p42, %s43, %s44
      %p48 = pneg %p42
      %p49 = scmp.eq.s32.totalorder %s21, 5
      %p50 = por %p48, %p49
      %p51 = scmp.ne.s32.totalorder %s43, %s46
      %p52 = scmp.eq.s32.totalorder %s21, 0
      %p53 = por %p51, %p52
      %p54 = scmp.ne.s32.totalorder %s43, %s46
      %p55 = scmp.eq.s32.totalorder %s26, 5
      %p56 = por %p54, %p55
      %p57 = scmp.ne.s32.totalorder %s46, %s47
      %p58 = scmp.eq.s32.totalorder %s26, 0
      %p59 = por %p57, %p58
      %p60 = scmp.ne.s32.totalorder %s46, %s47
      %p61 = scmp.eq.s32.totalorder %s27, 5
      %p62 = por %p60, %p61
      %p64 = scmp.ne.s32.totalorder %s47, %s63
      %p65 = scmp.eq.s32.totalorder %s27, 0
      %p66 = por %p64, %p65
      %s68 = sadd.s32 %s67, 1
      %p71 = scmp.eq.s32.totalorder %s21, 5
      %p72 = scmp.ne.s32.totalorder %s67, %s69
      %p73 = scmp.eq.s32.totalorder %s21, 0
      %p74 = por %p72, %p73
      %p75 = scmp.ne.s32.totalorder %s67, %s69
      %p76 = scmp.eq.s32.totalorder %s26, 5
      %p77 = por %p75, %p76
      %p78 = scmp.ne.s32.totalorder %s69, %s70
      %p79 = scmp.eq.s32.totalorder %s26, 0
      %p80 = por %p78, %p79
      %p81 = scmp.ne.s32.totalorder %s69, %s70
      %p82 = scmp.eq.s32.totalorder %s27, 5
      %p83 = por %p81, %p82
      %p85 = scmp.ne.s32.totalorder %s70, %s84
      %p86 = scmp.eq.s32.totalorder %s27, 0
      %p87 = por %p85, %p86
      %s89 = sadd.s32 %s88, 1
      %p92 = scmp.eq.s32.totalorder %s21, 5
      %p93 = scmp.ne.s32.totalorder %s88, %s90
      %p94 = scmp.eq.s32.totalorder %s21, 0
      %p95 = por %p93, %p94
      %p96 = scmp.ne.s32.totalorder %s88, %s90
      %p97 = scmp.eq.s32.totalorder %s26, 5
      %p98 = por %p96, %p97
      %p99 = scmp.ne.s32.totalorder %s90, %s91
      %p100 = scmp.eq.s32.totalorder %s26, 0
      %p101 = por %p99, %p100
      %p102 = scmp.ne.s32.totalorder %s90, %s91
      %p103 = scmp.eq.s32.totalorder %s27, 5
      %p104 = por %p102, %p103
      %p106 = scmp.ne.s32.totalorder %s91, %s105
      %p107 = scmp.eq.s32.totalorder %s27, 0
      %p108 = por %p106, %p107
      %s109 = ssub.s32 %s29, %s36
      %p110 = scmp.eq.s32.totalorder %s109, 0
      %s112 = sadd.s32 %s111, 1
      %s113 = scalar_select %p110, %s111, %s112
      %p116 = pneg %p110
      %p117 = scmp.eq.s32.totalorder %s21, 5
      %p118 = por %p116, %p117
      %p119 = scmp.ne.s32.totalorder %s111, %s114
      %p120 = scmp.eq.s32.totalorder %s21, 0
      %p121 = por %p119, %p120
      %p122 = scmp.ne.s32.totalorder %s111, %s114
      %p123 = scmp.eq.s32.totalorder %s26, 5
      %p124 = por %p122, %p123
      %p125 = scmp.ne.s32.totalorder %s114, %s115
      %p126 = scmp.eq.s32.totalorder %s26, 0
      %p127 = por %p125, %p126
      %p128 = scmp.ne.s32.totalorder %s114, %s115
      %p129 = scmp.eq.s32.totalorder %s27, 5
      %p130 = por %p128, %p129
      %p132 = scmp.ne.s32.totalorder %s115, %s131
      %p133 = scmp.eq.s32.totalorder %s27, 0
      %p134 = por %p132, %p133
      %s135 = ssub.s32 %s29, %s36
      %p136 = scmp.eq.s32.totalorder %s135, 0
      %s138 = sadd.s32 %s137, 1
      %s139 = scalar_select %p136, %s137, %s138
      %p142 = pneg %p136
      %p143 = scmp.eq.s32.totalorder %s21, 5
      %p144 = por %p142, %p143
      %p145 = scmp.ne.s32.totalorder %s137, %s140
      %p146 = scmp.eq.s32.totalorder %s21, 0
      %p147 = por %p145, %p146
      %p148 = scmp.ne.s32.totalorder %s137, %s140
      %p149 = scmp.eq.s32.totalorder %s26, 5
      %p150 = por %p148, %p149
      %p151 = scmp.ne.s32.totalorder %s140, %s141
      %p152 = scmp.eq.s32.totalorder %s26, 0
      %p153 = por %p151, %p152
      %p154 = scmp.ne.s32.totalorder %s140, %s141
      %p155 = scmp.eq.s32.totalorder %s27, 5
      %p156 = por %p154, %p155
      %p158 = scmp.ne.s32.totalorder %s141, %s157
      %p159 = scmp.eq.s32.totalorder %s27, 0
      %p160 = por %p158, %p159
      %s161 = ssub.s32 %s28, %s40
      %s162 = ssub.s32 %s29, %s36
      %s163 = sor.u32 %s161, %s162
      %p164 = scmp.eq.s32.totalorder %s163, 0
      %s166 = sadd.s32 %s165, 1
      %s167 = scalar_select %p164, %s165, %s166
      %p170 = pneg %p164
      %p171 = scmp.eq.s32.totalorder %s21, 5
      %p172 = por %p170, %p171
      %p173 = scmp.ne.s32.totalorder %s165, %s168
      %p174 = scmp.eq.s32.totalorder %s21, 0
      %p175 = por %p173, %p174
      %p176 = scmp.ne.s32.totalorder %s165, %s168
      %p177 = scmp.eq.s32.totalorder %s26, 5
      %p178 = por %p176, %p177
      %p179 = scmp.ne.s32.totalorder %s168, %s169
      %p180 = scmp.eq.s32.totalorder %s26, 0
      %p181 = por %p179, %p180
      %p182 = scmp.ne.s32.totalorder %s168, %s169
      %p183 = scmp.eq.s32.totalorder %s27, 5
      %p184 = por %p182, %p183
      %p186 = scmp.ne.s32.totalorder %s169, %s185
      %p187 = scmp.eq.s32.totalorder %s27, 0
      %p188 = por %p186, %p187
      %p189 = scmp.le.s32.totalorder 1, %s21
      %p190 = scmp.lt.s32.totalorder %s21, 7
      %p191 = pnand %p189, %p190
      %p192 = pneg %p191
      // Predicated region
      $region9: #{tpu_custom_call.1} parent=5 // pred_check
        _
      $region10: #{tpu_custom_call.1} parent=5 // pred_check_branch
        %194 = sbr.rel (%p191) target = $region12
      $region11: #{tpu_custom_call.1} parent=5 // pred_region
        %s195 = ssub.s32 %s21, 1
        // Predicated region
        $region13: #{tpu_custom_call.1} parent=11 // pred_check
          %p196 = pneg %p80
        $region14: #{tpu_custom_call.1} parent=11 // pred_check_branch
          %198 = sbr.rel (%p196) target = $region16
        $region15: #{tpu_custom_call.1} parent=11 // pred_region
          %200 = vsyncadd [#allocation7], 0
          %s202 = sshll.u32 %s1, 4
          %s203 = int_to_ptr.hbm [resolvable:$true] %s202
          %s204 = sshll.u32 [#allocation6], 4
          %s205 = int_to_ptr.vmem [resolvable:$true] %s204
          %207 = dma.hbm_to_vmem [thread:$0]  %s203, 32, %s205, [#allocation7]
        $region16: #{tpu_custom_call.1} parent=11 // pred_fallthru
          _
        // Predicated region
        $region17: #{tpu_custom_call.1} parent=11 // pred_check
          %p208 = pneg %p101
        $region18: #{tpu_custom_call.1} parent=11 // pred_check_branch
          %210 = sbr.rel (%p208) target = $region20
        $region19: #{tpu_custom_call.1} parent=11 // pred_region
          %212 = vsyncadd [#allocation7], 0
          %s214 = sshll.u32 %s2, 4
          %s215 = int_to_ptr.hbm [resolvable:$true] %s214
          %s216 = sshll.u32 [#allocation8], 4
          %s217 = int_to_ptr.vmem [resolvable:$true] %s216
          %219 = dma.hbm_to_vmem [thread:$0]  %s215, 32, %s217, [#allocation7]
        $region20: #{tpu_custom_call.1} parent=11 // pred_fallthru
          _
      $region12: #{tpu_custom_call.1} parent=5 // pred_fallthru
        _
      %p220 = scmp.lt.s32.totalorder %s21, 6
      // Predicated region
      $region21: #{tpu_custom_call.1} parent=5 // pred_check
        %p221 = pneg %p220
      $region22: #{tpu_custom_call.1} parent=5 // pred_check_branch
        %223 = sbr.rel (%p221) target = $region24
      $region23: #{tpu_custom_call.1} parent=5 // pred_region
        // Predicated region
        $region25: #{tpu_custom_call.1} parent=23 // pred_check
          %p224 = pneg %p53
        $region26: #{tpu_custom_call.1} parent=23 // pred_check_branch
          %226 = sbr.rel (%p224) target = $region28
        $region27: #{tpu_custom_call.1} parent=23 // pred_region
          %s227 = sand.u32 %s43, 1
          %s228 = scalar_lea.sflag [#allocation4], %s227
          %s229 = sand.u32 %s43, 1
          %s230 = smul.addr %s229, 256
          %s231 = scalar_lea.vmem [#allocation3], %s230
          %s232 = smul.u32 16, %s28
          %234 = vsyncadd %s228, 0
          %s235 = smul.addr %s232, 2
          %s236 = smul.addr %s235, 8
          %s237 = scalar_lea.hbm %s0, %s236
          %s238 = sshll.u32 %s237, 4
          %s239 = int_to_ptr.hbm [resolvable:$true] %s238
          %s240 = sshll.u32 %s231, 4
          %s241 = int_to_ptr.vmem [resolvable:$true] %s240
          %246 = dma.hbm_to_vmem [thread:$0]  %s239, 4096, %s241, %s228, 256, 256, 16
        $region28: #{tpu_custom_call.1} parent=23 // pred_fallthru
          _
        // Predicated region
        $region29: #{tpu_custom_call.1} parent=23 // pred_check
          %p247 = pneg %p121
        $region30: #{tpu_custom_call.1} parent=23 // pred_check_branch
          %249 = sbr.rel (%p247) target = $region32
        $region31: #{tpu_custom_call.1} parent=23 // pred_region
          %s250 = sand.u32 %s111, 1
          %s251 = scalar_lea.sflag [#allocation10], %s250
          %s252 = sand.u32 %s111, 1
          %s253 = smul.addr %s252, 128
          %s254 = scalar_lea.vmem [#allocation9], %s253
          %256 = vsyncadd %s251, 0
          %s257 = smul.addr %s29, 4
          %s258 = scalar_lea.hbm %s3, %s257
          %s259 = sshll.u32 %s258, 4
          %s260 = int_to_ptr.hbm [resolvable:$true] %s259
          %s261 = sshll.u32 %s254, 4
          %s262 = int_to_ptr.vmem [resolvable:$true] %s261
          %267 = dma.hbm_to_vmem [thread:$0]  %s260, 2048, %s262, %s251, 128, 64, 4
        $region32: #{tpu_custom_call.1} parent=23 // pred_fallthru
          _
        // Predicated region
        $region33: #{tpu_custom_call.1} parent=23 // pred_check
          %p268 = pneg %p147
        $region34: #{tpu_custom_call.1} parent=23 // pred_check_branch
          %270 = sbr.rel (%p268) target = $region36
        $region35: #{tpu_custom_call.1} parent=23 // pred_region
          %p271 = scmp.lt.s32.totalorder %s29, 1
          %s272 = scalar_select %p271, %s29, 1
          %s273 = scalar_lea.vmem %s4, %s272
        $region36: #{tpu_custom_call.1} parent=23 // pred_fallthru
          _
      $region24: #{tpu_custom_call.1} parent=5 // pred_fallthru
        _
      %p274 = scmp.le.s32.totalorder 1, %s21
      %p275 = scmp.lt.s32.totalorder %s21, 7
      %p276 = pnand %p274, %p275
      %p277 = pneg %p276
      // Predicated region
      $region37: #{tpu_custom_call.1} parent=5 // pred_check
        _
      $region38: #{tpu_custom_call.1} parent=5 // pred_check_branch
        %279 = sbr.rel (%p276) target = $region40
      $region39: #{tpu_custom_call.1} parent=5 // pred_region
        %s280 = ssub.s32 %s21, 1
        %s281 = sand.u32 %s46, 1
        %s282 = scalar_lea.sflag [#allocation4], %s281
        %s283 = sand.u32 %s46, 1
        %s284 = smul.addr %s283, 256
        %s285 = scalar_lea.vmem [#allocation3], %s284
        // Predicated region
        $region41: #{tpu_custom_call.1} parent=39 // pred_check
          %p286 = pneg %p59
        $region42: #{tpu_custom_call.1} parent=39 // pred_check_branch
          %288 = sbr.rel (%p286) target = $region44
        $region43: #{tpu_custom_call.1} parent=39 // pred_region
          %290 = dma.done %s282, 4096
        $region44: #{tpu_custom_call.1} parent=39 // pred_fallthru
          _
        // Predicated region
        $region45: #{tpu_custom_call.1} parent=39 // pred_check
          %p291 = pneg %p80
        $region46: #{tpu_custom_call.1} parent=39 // pred_check_branch
          %293 = sbr.rel (%p291) target = $region48
        $region47: #{tpu_custom_call.1} parent=39 // pred_region
          %295 = dma.done [#allocation7], 32
        $region48: #{tpu_custom_call.1} parent=39 // pred_fallthru
          _
        // Predicated region
        $region49: #{tpu_custom_call.1} parent=39 // pred_check
          %p296 = pneg %p101
        $region50: #{tpu_custom_call.1} parent=39 // pred_check_branch
          %298 = sbr.rel (%p296) target = $region52
        $region51: #{tpu_custom_call.1} parent=39 // pred_region
          %300 = dma.done [#allocation7], 32
        $region52: #{tpu_custom_call.1} parent=39 // pred_fallthru
          _
        %s301 = sand.u32 %s114, 1
        %s302 = scalar_lea.sflag [#allocation10], %s301
        %s303 = sand.u32 %s114, 1
        %s304 = smul.addr %s303, 128
        %s305 = scalar_lea.vmem [#allocation9], %s304
        // Predicated region
        $region53: #{tpu_custom_call.1} parent=39 // pred_check
          %p306 = pneg %p127
        $region54: #{tpu_custom_call.1} parent=39 // pred_check_branch
          %308 = sbr.rel (%p306) target = $region56
        $region55: #{tpu_custom_call.1} parent=39 // pred_region
          %310 = dma.done %s302, 2048
        $region56: #{tpu_custom_call.1} parent=39 // pred_fallthru
          _
        %s311 = sand.u32 %s46, 1
        %s312 = scalar_lea.sflag [#allocation4], %s311
        %s313 = sand.u32 %s46, 1
        %s314 = smul.addr %s313, 256
        %s315 = scalar_lea.vmem [#allocation3], %s314
        %p316 = pneg %p59
        %p317 = pneg %p56
        %p318 = pneg %p80
        %p319 = pneg %p77
        %p320 = pneg %p101
        %p321 = pneg %p98
        %s322 = sand.u32 %s114, 1
        %s323 = scalar_lea.sflag [#allocation10], %s322
        %s324 = sand.u32 %s114, 1
        %s325 = smul.addr %s324, 128
        %s326 = scalar_lea.vmem [#allocation9], %s325
        %p327 = pneg %p127
        %p328 = pneg %p124
        %p329 = scmp.lt.s32.totalorder %s31, 1
        %s330 = scalar_select %p329, %s31, 1
        %s331 = scalar_lea.vmem %s4, %s330
        %p332 = pneg %p153
        %p333 = pneg %p150
        %p334 = pneg %p181
        %p335 = pneg %p178
        %s336 = sand.u32 %s168, 1
        %s337 = scalar_lea.sflag [#allocation5], %s336
        %s338 = sand.u32 %s168, 1
        %s339 = smul.addr %s338, 128
        %s340 = scalar_lea.vmem [#allocation11], %s339
        %s341 = smul.u32 16, %s30
        %p342 = scmp.lt.s32.totalorder %s31, 1
        %s343 = scalar_select %p342, %s31, 1
        %s344 = scalar_lea.vmem %s4, %s343
        %s345 = smul.u32 16, %s30
        %p346 = scmp.eq.s32.totalorder %s31, 0
        // Predicated region
        $region57: #{tpu_custom_call.1} parent=39 // pred_check
          %p347 = pneg %p346
        $region58: #{tpu_custom_call.1} parent=39 // pred_check_branch
          %349 = sbr.rel (%p347) target = $region60
        $region59: #{tpu_custom_call.1} parent=39 // pred_region
          %v350 = vld [vmem:[%s285] sm:$0xff]
          %v351 = vld [vmem:[%s285 + $0x8] sm:$0xff]
          %v352 = vld [vmem:[%s285 + $0x10] sm:$0xff]
          %v353 = vld [vmem:[%s285 + $0x18] sm:$0xff]
          %v354 = vld [vmem:[%s285 + $0x20] sm:$0xff]
          %v355 = vld [vmem:[%s285 + $0x28] sm:$0xff]
          %v356 = vld [vmem:[%s285 + $0x30] sm:$0xff]
          %v357 = vld [vmem:[%s285 + $0x38] sm:$0xff]
          %v358 = vld [vmem:[%s285 + $0x40] sm:$0xff]
          %v359 = vld [vmem:[%s285 + $0x48] sm:$0xff]
          %v360 = vld [vmem:[%s285 + $0x50] sm:$0xff]
          %v361 = vld [vmem:[%s285 + $0x58] sm:$0xff]
          %v362 = vld [vmem:[%s285 + $0x60] sm:$0xff]
          %v363 = vld [vmem:[%s285 + $0x68] sm:$0xff]
          %v364 = vld [vmem:[%s285 + $0x70] sm:$0xff]
          %v365 = vld [vmem:[%s285 + $0x78] sm:$0xff]
          %v366 = vld [vmem:[%s285 + $0x80] sm:$0xff]
          %v367 = vld [vmem:[%s285 + $0x88] sm:$0xff]
          %v368 = vld [vmem:[%s285 + $0x90] sm:$0xff]
          %v369 = vld [vmem:[%s285 + $0x98] sm:$0xff]
          %v370 = vld [vmem:[%s285 + $0xa0] sm:$0xff]
          %v371 = vld [vmem:[%s285 + $0xa8] sm:$0xff]
          %v372 = vld [vmem:[%s285 + $0xb0] sm:$0xff]
          %v373 = vld [vmem:[%s285 + $0xb8] sm:$0xff]
          %v374 = vld [vmem:[%s285 + $0xc0] sm:$0xff]
          %v375 = vld [vmem:[%s285 + $0xc8] sm:$0xff]
          %v376 = vld [vmem:[%s285 + $0xd0] sm:$0xff]
          %v377 = vld [vmem:[%s285 + $0xd8] sm:$0xff]
          %v378 = vld [vmem:[%s285 + $0xe0] sm:$0xff]
          %v379 = vld [vmem:[%s285 + $0xe8] sm:$0xff]
          %v380 = vld [vmem:[%s285 + $0xf0] sm:$0xff]
          %v381 = vld [vmem:[%s285 + $0xf8] sm:$0xff]
          %v382 = vadd.f32 %v350, %v351
          %383 = vadd.xlane.f32.xlu0 %v382
          %v384 = vpop.xlane.xlu0 %383
          %v385 = vadd.f32 %v352, %v353
          %386 = vadd.xlane.f32.xlu0 %v385
          %v387 = vpop.xlane.xlu0 %386
          %v388 = vadd.f32 %v354, %v355
          %389 = vadd.xlane.f32.xlu0 %v388
          %v390 = vpop.xlane.xlu0 %389
          %v391 = vadd.f32 %v356, %v357
          %392 = vadd.xlane.f32.xlu0 %v391
          %v393 = vpop.xlane.xlu0 %392
          %v394 = vadd.f32 %v358, %v359
          %395 = vadd.xlane.f32.xlu0 %v394
          %v396 = vpop.xlane.xlu0 %395
          %v397 = vadd.f32 %v360, %v361
          %398 = vadd.xlane.f32.xlu0 %v397
          %v399 = vpop.xlane.xlu0 %398
          %v400 = vadd.f32 %v362, %v363
          %401 = vadd.xlane.f32.xlu0 %v400
          %v402 = vpop.xlane.xlu0 %401
          %v403 = vadd.f32 %v364, %v365
          %404 = vadd.xlane.f32.xlu0 %v403
          %v405 = vpop.xlane.xlu0 %404
          %v406 = vadd.f32 %v366, %v367
          %407 = vadd.xlane.f32.xlu0 %v406
          %v408 = vpop.xlane.xlu0 %407
          %v409 = vadd.f32 %v368, %v369
          %410 = vadd.xlane.f32.xlu0 %v409
          %v411 = vpop.xlane.xlu0 %410
          %v412 = vadd.f32 %v370, %v371
          %413 = vadd.xlane.f32.xlu0 %v412
          %v414 = vpop.xlane.xlu0 %413
          %v415 = vadd.f32 %v372, %v373
          %416 = vadd.xlane.f32.xlu0 %v415
          %v417 = vpop.xlane.xlu0 %416
          %v418 = vadd.f32 %v374, %v375
          %419 = vadd.xlane.f32.xlu0 %v418
          %v420 = vpop.xlane.xlu0 %419
          %v421 = vadd.f32 %v376, %v377
          %422 = vadd.xlane.f32.xlu0 %v421
          %v423 = vpop.xlane.xlu0 %422
          %v424 = vadd.f32 %v378, %v379
          %425 = vadd.xlane.f32.xlu0 %v424
          %v426 = vpop.xlane.xlu0 %425
          %v427 = vadd.f32 %v380, %v381
          %428 = vadd.xlane.f32.xlu0 %v427
          %v429 = vpop.xlane.xlu0 %428
          %v430 = vmul.f32 %v384, 0.00390625
          %v431 = vmul.f32 %v387, 0.00390625
          %v432 = vmul.f32 %v390, 0.00390625
          %v433 = vmul.f32 %v393, 0.00390625
          %v434 = vmul.f32 %v396, 0.00390625
          %v435 = vmul.f32 %v399, 0.00390625
          %v436 = vmul.f32 %v402, 0.00390625
          %v437 = vmul.f32 %v405, 0.00390625
          %v438 = vmul.f32 %v408, 0.00390625
          %v439 = vmul.f32 %v411, 0.00390625
          %v440 = vmul.f32 %v414, 0.00390625
          %v441 = vmul.f32 %v417, 0.00390625
          %v442 = vmul.f32 %v420, 0.00390625
          %v443 = vmul.f32 %v423, 0.00390625
          %v444 = vmul.f32 %v426, 0.00390625
          %v445 = vmul.f32 %v429, 0.00390625
          %v446 = vsub.f32 %v350, %v430
          %v447 = vsub.f32 %v351, %v430
          %v448 = vsub.f32 %v352, %v431
          %v449 = vsub.f32 %v353, %v431
          %v450 = vsub.f32 %v354, %v432
          %v451 = vsub.f32 %v355, %v432
          %v452 = vsub.f32 %v356, %v433
          %v453 = vsub.f32 %v357, %v433
          %v454 = vsub.f32 %v358, %v434
          %v455 = vsub.f32 %v359, %v434
          %v456 = vsub.f32 %v360, %v435
          %v457 = vsub.f32 %v361, %v435
          %v458 = vsub.f32 %v362, %v436
          %v459 = vsub.f32 %v363, %v436
          %v460 = vsub.f32 %v364, %v437
          %v461 = vsub.f32 %v365, %v437
          %v462 = vsub.f32 %v366, %v438
          %v463 = vsub.f32 %v367, %v438
          %v464 = vsub.f32 %v368, %v439
          %v465 = vsub.f32 %v369, %v439
          %v466 = vsub.f32 %v370, %v440
          %v467 = vsub.f32 %v371, %v440
          %v468 = vsub.f32 %v372, %v441
          %v469 = vsub.f32 %v373, %v441
          %v470 = vsub.f32 %v374, %v442
          %v471 = vsub.f32 %v375, %v442
          %v472 = vsub.f32 %v376, %v443
          %v473 = vsub.f32 %v377, %v443
          %v474 = vsub.f32 %v378, %v444
          %v475 = vsub.f32 %v379, %v444
          %v476 = vsub.f32 %v380, %v445
          %v477 = vsub.f32 %v381, %v445
          %v478 = vmul.f32 %v446, %v446
          %v479 = vmul.f32 %v447, %v447
          %v480 = vmul.f32 %v448, %v448
          %v481 = vmul.f32 %v449, %v449
          %v482 = vmul.f32 %v450, %v450
          %v483 = vmul.f32 %v451, %v451
          %v484 = vmul.f32 %v452, %v452
          %v485 = vmul.f32 %v453, %v453
          %v486 = vmul.f32 %v454, %v454
          %v487 = vmul.f32 %v455, %v455
          %v488 = vmul.f32 %v456, %v456
          %v489 = vmul.f32 %v457, %v457
          %v490 = vmul.f32 %v458, %v458
          %v491 = vmul.f32 %v459, %v459
          %v492 = vmul.f32 %v460, %v460
          %v493 = vmul.f32 %v461, %v461
          %v494 = vmul.f32 %v462, %v462
          %v495 = vmul.f32 %v463, %v463
          %v496 = vmul.f32 %v464, %v464
          %v497 = vmul.f32 %v465, %v465
          %v498 = vmul.f32 %v466, %v466
          %v499 = vmul.f32 %v467, %v467
          %v500 = vmul.f32 %v468, %v468
          %v501 = vmul.f32 %v469, %v469
          %v502 = vmul.f32 %v470, %v470
          %v503 = vmul.f32 %v471, %v471
          %v504 = vmul.f32 %v472, %v472
          %v505 = vmul.f32 %v473, %v473
          %v506 = vmul.f32 %v474, %v474
          %v507 = vmul.f32 %v475, %v475
          %v508 = vmul.f32 %v476, %v476
          %v509 = vmul.f32 %v477, %v477
          %v510 = vadd.f32 %v478, %v479
          %511 = vadd.xlane.f32.xlu0 %v510
          %v512 = vpop.xlane.xlu0 %511
          %v513 = vadd.f32 %v480, %v481
          %514 = vadd.xlane.f32.xlu0 %v513
          %v515 = vpop.xlane.xlu0 %514
          %v516 = vadd.f32 %v482, %v483
          %517 = vadd.xlane.f32.xlu0 %v516
          %v518 = vpop.xlane.xlu0 %517
          %v519 = vadd.f32 %v484, %v485
          %520 = vadd.xlane.f32.xlu0 %v519
          %v521 = vpop.xlane.xlu0 %520
          %v522 = vadd.f32 %v486, %v487
          %523 = vadd.xlane.f32.xlu0 %v522
          %v524 = vpop.xlane.xlu0 %523
          %v525 = vadd.f32 %v488, %v489
          %526 = vadd.xlane.f32.xlu0 %v525
          %v527 = vpop.xlane.xlu0 %526
          %v528 = vadd.f32 %v490, %v491
          %529 = vadd.xlane.f32.xlu0 %v528
          %v530 = vpop.xlane.xlu0 %529
          %v531 = vadd.f32 %v492, %v493
          %532 = vadd.xlane.f32.xlu0 %v531
          %v533 = vpop.xlane.xlu0 %532
          %v534 = vadd.f32 %v494, %v495
          %535 = vadd.xlane.f32.xlu0 %v534
          %v536 = vpop.xlane.xlu0 %535
          %v537 = vadd.f32 %v496, %v497
          %538 = vadd.xlane.f32.xlu0 %v537
          %v539 = vpop.xlane.xlu0 %538
          %v540 = vadd.f32 %v498, %v499
          %541 = vadd.xlane.f32.xlu0 %v540
          %v542 = vpop.xlane.xlu0 %541
          %v543 = vadd.f32 %v500, %v501
          %544 = vadd.xlane.f32.xlu0 %v543
          %v545 = vpop.xlane.xlu0 %544
          %v546 = vadd.f32 %v502, %v503
          %547 = vadd.xlane.f32.xlu0 %v546
          %v548 = vpop.xlane.xlu0 %547
          %v549 = vadd.f32 %v504, %v505
          %550 = vadd.xlane.f32.xlu0 %v549
          %v551 = vpop.xlane.xlu0 %550
          %v552 = vadd.f32 %v506, %v507
          %553 = vadd.xlane.f32.xlu0 %v552
          %v554 = vpop.xlane.xlu0 %553
          %v555 = vadd.f32 %v508, %v509
          %556 = vadd.xlane.f32.xlu0 %v555
          %v557 = vpop.xlane.xlu0 %556
          %v558 = vmul.f32 %v512, 0.00390625
          %v559 = vmul.f32 %v515, 0.00390625
          %v560 = vmul.f32 %v518, 0.00390625
          %v561 = vmul.f32 %v521, 0.00390625
          %v562 = vmul.f32 %v524, 0.00390625
          %v563 = vmul.f32 %v527, 0.00390625
          %v564 = vmul.f32 %v530, 0.00390625
          %v565 = vmul.f32 %v533, 0.00390625
          %v566 = vmul.f32 %v536, 0.00390625
          %v567 = vmul.f32 %v539, 0.00390625
          %v568 = vmul.f32 %v542, 0.00390625
          %v569 = vmul.f32 %v545, 0.00390625
          %v570 = vmul.f32 %v548, 0.00390625
          %v571 = vmul.f32 %v551, 0.00390625
          %v572 = vmul.f32 %v554, 0.00390625
          %v573 = vmul.f32 %v557, 0.00390625
          %v574 = vadd.f32 %v558, 1e-05
          %v575 = vadd.f32 %v559, 1e-05
          %v576 = vadd.f32 %v560, 1e-05
          %v577 = vadd.f32 %v561, 1e-05
          %v578 = vadd.f32 %v562, 1e-05
          %v579 = vadd.f32 %v563, 1e-05
          %v580 = vadd.f32 %v564, 1e-05
          %v581 = vadd.f32 %v565, 1e-05
          %v582 = vadd.f32 %v566, 1e-05
          %v583 = vadd.f32 %v567, 1e-05
          %v584 = vadd.f32 %v568, 1e-05
          %v585 = vadd.f32 %v569, 1e-05
          %v586 = vadd.f32 %v570, 1e-05
          %v587 = vadd.f32 %v571, 1e-05
          %v588 = vadd.f32 %v572, 1e-05
          %v589 = vadd.f32 %v573, 1e-05
          %v590 = vrsqrt.pop %v574
          %v591 = vmul.f32 %v590, %v574
          %v592 = vmul.f32 %v591, %v590
          %v593 = vmul.f32 0.5, %v592
          %v594 = vsub.f32 1.5, %v593
          %v595 = vmul.f32 %v590, %v594
          %vm596 = vweird.f32 %v574
          %vm597 = vweird.f32 %v590
          %vm598 = vmor %vm596, %vm597
          %v599 = vsel %vm598, %v590, %v595
          %v600 = vrsqrt.pop %v575
          %v601 = vmul.f32 %v600, %v575
          %v602 = vmul.f32 %v601, %v600
          %v603 = vmul.f32 0.5, %v602
          %v604 = vsub.f32 1.5, %v603
          %v605 = vmul.f32 %v600, %v604
          %vm606 = vweird.f32 %v575
          %vm607 = vweird.f32 %v600
          %vm608 = vmor %vm606, %vm607
          %v609 = vsel %vm608, %v600, %v605
          %v610 = vrsqrt.pop %v576
          %v611 = vmul.f32 %v610, %v576
          %v612 = vmul.f32 %v611, %v610
          %v613 = vmul.f32 0.5, %v612
          %v614 = vsub.f32 1.5, %v613
          %v615 = vmul.f32 %v610, %v614
          %vm616 = vweird.f32 %v576
          %vm617 = vweird.f32 %v610
          %vm618 = vmor %vm616, %vm617
          %v619 = vsel %vm618, %v610, %v615
          %v620 = vrsqrt.pop %v577
          %v621 = vmul.f32 %v620, %v577
          %v622 = vmul.f32 %v621, %v620
          %v623 = vmul.f32 0.5, %v622
          %v624 = vsub.f32 1.5, %v623
          %v625 = vmul.f32 %v620, %v624
          %vm626 = vweird.f32 %v577
          %vm627 = vweird.f32 %v620
          %vm628 = vmor %vm626, %vm627
          %v629 = vsel %vm628, %v620, %v625
          %v630 = vrsqrt.pop %v578
          %v631 = vmul.f32 %v630, %v578
          %v632 = vmul.f32 %v631, %v630
          %v633 = vmul.f32 0.5, %v632
          %v634 = vsub.f32 1.5, %v633
          %v635 = vmul.f32 %v630, %v634
          %vm636 = vweird.f32 %v578
          %vm637 = vweird.f32 %v630
          %vm638 = vmor %vm636, %vm637
          %v639 = vsel %vm638, %v630, %v635
          %v640 = vrsqrt.pop %v579
          %v641 = vmul.f32 %v640, %v579
          %v642 = vmul.f32 %v641, %v640
          %v643 = vmul.f32 0.5, %v642
          %v644 = vsub.f32 1.5, %v643
          %v645 = vmul.f32 %v640, %v644
          %vm646 = vweird.f32 %v579
          %vm647 = vweird.f32 %v640
          %vm648 = vmor %vm646, %vm647
          %v649 = vsel %vm648, %v640, %v645
          %v650 = vrsqrt.pop %v580
          %v651 = vmul.f32 %v650, %v580
          %v652 = vmul.f32 %v651, %v650
          %v653 = vmul.f32 0.5, %v652
          %v654 = vsub.f32 1.5, %v653
          %v655 = vmul.f32 %v650, %v654
          %vm656 = vweird.f32 %v580
          %vm657 = vweird.f32 %v650
          %vm658 = vmor %vm656, %vm657
          %v659 = vsel %vm658, %v650, %v655
          %v660 = vrsqrt.pop %v581
          %v661 = vmul.f32 %v660, %v581
          %v662 = vmul.f32 %v661, %v660
          %v663 = vmul.f32 0.5, %v662
          %v664 = vsub.f32 1.5, %v663
          %v665 = vmul.f32 %v660, %v664
          %vm666 = vweird.f32 %v581
          %vm667 = vweird.f32 %v660
          %vm668 = vmor %vm666, %vm667
          %v669 = vsel %vm668, %v660, %v665
          %v670 = vrsqrt.pop %v582
          %v671 = vmul.f32 %v670, %v582
          %v672 = vmul.f32 %v671, %v670
          %v673 = vmul.f32 0.5, %v672
          %v674 = vsub.f32 1.5, %v673
          %v675 = vmul.f32 %v670, %v674
          %vm676 = vweird.f32 %v582
          %vm677 = vweird.f32 %v670
          %vm678 = vmor %vm676, %vm677
          %v679 = vsel %vm678, %v670, %v675
          %v680 = vrsqrt.pop %v583
          %v681 = vmul.f32 %v680, %v583
          %v682 = vmul.f32 %v681, %v680
          %v683 = vmul.f32 0.5, %v682
          %v684 = vsub.f32 1.5, %v683
          %v685 = vmul.f32 %v680, %v684
          %vm686 = vweird.f32 %v583
          %vm687 = vweird.f32 %v680
          %vm688 = vmor %vm686, %vm687
          %v689 = vsel %vm688, %v680, %v685
          %v690 = vrsqrt.pop %v584
          %v691 = vmul.f32 %v690, %v584
          %v692 = vmul.f32 %v691, %v690
          %v693 = vmul.f32 0.5, %v692
          %v694 = vsub.f32 1.5, %v693
          %v695 = vmul.f32 %v690, %v694
          %vm696 = vweird.f32 %v584
          %vm697 = vweird.f32 %v690
          %vm698 = vmor %vm696, %vm697
          %v699 = vsel %vm698, %v690, %v695
          %v700 = vrsqrt.pop %v585
          %v701 = vmul.f32 %v700, %v585
          %v702 = vmul.f32 %v701, %v700
          %v703 = vmul.f32 0.5, %v702
          %v704 = vsub.f32 1.5, %v703
          %v705 = vmul.f32 %v700, %v704
          %vm706 = vweird.f32 %v585
          %vm707 = vweird.f32 %v700
          %vm708 = vmor %vm706, %vm707
          %v709 = vsel %vm708, %v700, %v705
          %v710 = vrsqrt.pop %v586
          %v711 = vmul.f32 %v710, %v586
          %v712 = vmul.f32 %v711, %v710
          %v713 = vmul.f32 0.5, %v712
          %v714 = vsub.f32 1.5, %v713
          %v715 = vmul.f32 %v710, %v714
          %vm716 = vweird.f32 %v586
          %vm717 = vweird.f32 %v710
          %vm718 = vmor %vm716, %vm717
          %v719 = vsel %vm718, %v710, %v715
          %v720 = vrsqrt.pop %v587
          %v721 = vmul.f32 %v720, %v587
          %v722 = vmul.f32 %v721, %v720
          %v723 = vmul.f32 0.5, %v722
          %v724 = vsub.f32 1.5, %v723
          %v725 = vmul.f32 %v720, %v724
          %vm726 = vweird.f32 %v587
          %vm727 = vweird.f32 %v720
          %vm728 = vmor %vm726, %vm727
          %v729 = vsel %vm728, %v720, %v725
          %v730 = vrsqrt.pop %v588
          %v731 = vmul.f32 %v730, %v588
          %v732 = vmul.f32 %v731, %v730
          %v733 = vmul.f32 0.5, %v732
          %v734 = vsub.f32 1.5, %v733
          %v735 = vmul.f32 %v730, %v734
          %vm736 = vweird.f32 %v588
          %vm737 = vweird.f32 %v730
          %vm738 = vmor %vm736, %vm737
          %v739 = vsel %vm738, %v730, %v735
          %v740 = vrsqrt.pop %v589
          %v741 = vmul.f32 %v740, %v589
          %v742 = vmul.f32 %v741, %v740
          %v743 = vmul.f32 0.5, %v742
          %v744 = vsub.f32 1.5, %v743
          %v745 = vmul.f32 %v740, %v744
          %vm746 = vweird.f32 %v589
          %vm747 = vweird.f32 %v740
          %vm748 = vmor %vm746, %vm747
          %v749 = vsel %vm748, %v740, %v745
          %v750 = vmul.f32 %v446, %v599
          %v751 = vmul.f32 %v447, %v599
          %v752 = vmul.f32 %v448, %v609
          %v753 = vmul.f32 %v449, %v609
          %v754 = vmul.f32 %v450, %v619
          %v755 = vmul.f32 %v451, %v619
          %v756 = vmul.f32 %v452, %v629
          %v757 = vmul.f32 %v453, %v629
          %v758 = vmul.f32 %v454, %v639
          %v759 = vmul.f32 %v455, %v639
          %v760 = vmul.f32 %v456, %v649
          %v761 = vmul.f32 %v457, %v649
          %v762 = vmul.f32 %v458, %v659
          %v763 = vmul.f32 %v459, %v659
          %v764 = vmul.f32 %v460, %v669
          %v765 = vmul.f32 %v461, %v669
          %v766 = vmul.f32 %v462, %v679
          %v767 = vmul.f32 %v463, %v679
          %v768 = vmul.f32 %v464, %v689
          %v769 = vmul.f32 %v465, %v689
          %v770 = vmul.f32 %v466, %v699
          %v771 = vmul.f32 %v467, %v699
          %v772 = vmul.f32 %v468, %v709
          %v773 = vmul.f32 %v469, %v709
          %v774 = vmul.f32 %v470, %v719
          %v775 = vmul.f32 %v471, %v719
          %v776 = vmul.f32 %v472, %v729
          %v777 = vmul.f32 %v473, %v729
          %v778 = vmul.f32 %v474, %v739
          %v779 = vmul.f32 %v475, %v739
          %v780 = vmul.f32 %v476, %v749
          %v781 = vmul.f32 %v477, %v749
          %v782 = vld [vmem:[#allocation6] sm:$0x3]
          %v784 = vperm.slane %v782, 0
          %v785 = vperm.slane %v782, 1
          %v788 = vmul.f32 %v750, %v784
          %v789 = vmul.f32 %v751, %v785
          %v790 = vmul.f32 %v752, %v784
          %v791 = vmul.f32 %v753, %v785
          %v792 = vmul.f32 %v754, %v784
          %v793 = vmul.f32 %v755, %v785
          %v794 = vmul.f32 %v756, %v784
          %v795 = vmul.f32 %v757, %v785
          %v796 = vmul.f32 %v758, %v784
          %v797 = vmul.f32 %v759, %v785
          %v798 = vmul.f32 %v760, %v784
          %v799 = vmul.f32 %v761, %v785
          %v800 = vmul.f32 %v762, %v784
          %v801 = vmul.f32 %v763, %v785
          %v802 = vmul.f32 %v764, %v784
          %v803 = vmul.f32 %v765, %v785
          %v804 = vmul.f32 %v766, %v784
          %v805 = vmul.f32 %v767, %v785
          %v806 = vmul.f32 %v768, %v784
          %v807 = vmul.f32 %v769, %v785
          %v808 = vmul.f32 %v770, %v784
          %v809 = vmul.f32 %v771, %v785
          %v810 = vmul.f32 %v772, %v784
          %v811 = vmul.f32 %v773, %v785
          %v812 = vmul.f32 %v774, %v784
          %v813 = vmul.f32 %v775, %v785
          %v814 = vmul.f32 %v776, %v784
          %v815 = vmul.f32 %v777, %v785
          %v816 = vmul.f32 %v778, %v784
          %v817 = vmul.f32 %v779, %v785
          %v818 = vmul.f32 %v780, %v784
          %v819 = vmul.f32 %v781, %v785
          %v820 = vld [vmem:[#allocation8] sm:$0x3]
          %v822 = vperm.slane %v820, 0
          %v823 = vperm.slane %v820, 1
          %v826 = vadd.f32 %v788, %v822
          %v827 = vadd.f32 %v789, %v823
          %v828 = vadd.f32 %v790, %v822
          %v829 = vadd.f32 %v791, %v823
          %v830 = vadd.f32 %v792, %v822
          %v831 = vadd.f32 %v793, %v823
          %v832 = vadd.f32 %v794, %v822
          %v833 = vadd.f32 %v795, %v823
          %v834 = vadd.f32 %v796, %v822
          %v835 = vadd.f32 %v797, %v823
          %v836 = vadd.f32 %v798, %v822
          %v837 = vadd.f32 %v799, %v823
          %v838 = vadd.f32 %v800, %v822
          %v839 = vadd.f32 %v801, %v823
          %v840 = vadd.f32 %v802, %v822
          %v841 = vadd.f32 %v803, %v823
          %v842 = vadd.f32 %v804, %v822
          %v843 = vadd.f32 %v805, %v823
          %v844 = vadd.f32 %v806, %v822
          %v845 = vadd.f32 %v807, %v823
          %v846 = vadd.f32 %v808, %v822
          %v847 = vadd.f32 %v809, %v823
          %v848 = vadd.f32 %v810, %v822
          %v849 = vadd.f32 %v811, %v823
          %v850 = vadd.f32 %v812, %v822
          %v851 = vadd.f32 %v813, %v823
          %v852 = vadd.f32 %v814, %v822
          %v853 = vadd.f32 %v815, %v823
          %v854 = vadd.f32 %v816, %v822
          %v855 = vadd.f32 %v817, %v823
          %v856 = vadd.f32 %v818, %v822
          %v857 = vadd.f32 %v819, %v823
          %v858 = vpack.c.bf16 %v827, %v826
          %v859 = vpack.c.bf16 %v829, %v828
          %v860 = vpack.c.bf16 %v831, %v830
          %v861 = vpack.c.bf16 %v833, %v832
          %v862 = vpack.c.bf16 %v835, %v834
          %v863 = vpack.c.bf16 %v837, %v836
          %v864 = vpack.c.bf16 %v839, %v838
          %v865 = vpack.c.bf16 %v841, %v840
          %v866 = vpack.c.bf16 %v843, %v842
          %v867 = vpack.c.bf16 %v845, %v844
          %v868 = vpack.c.bf16 %v847, %v846
          %v869 = vpack.c.bf16 %v849, %v848
          %v870 = vpack.c.bf16 %v851, %v850
          %v871 = vpack.c.bf16 %v853, %v852
          %v872 = vpack.c.bf16 %v855, %v854
          %v873 = vpack.c.bf16 %v857, %v856
          %874 = vst [vmem:[#allocation2] sm:$0xff] %v858
          %875 = vst [vmem:[#allocation2 + $0x8] sm:$0xff] %v859
          %876 = vst [vmem:[#allocation2 + $0x10] sm:$0xff] %v860
          %877 = vst [vmem:[#allocation2 + $0x18] sm:$0xff] %v861
          %878 = vst [vmem:[#allocation2 + $0x20] sm:$0xff] %v862
          %879 = vst [vmem:[#allocation2 + $0x28] sm:$0xff] %v863
          %880 = vst [vmem:[#allocation2 + $0x30] sm:$0xff] %v864
          %881 = vst [vmem:[#allocation2 + $0x38] sm:$0xff] %v865
          %882 = vst [vmem:[#allocation2 + $0x40] sm:$0xff] %v866
          %883 = vst [vmem:[#allocation2 + $0x48] sm:$0xff] %v867
          %884 = vst [vmem:[#allocation2 + $0x50] sm:$0xff] %v868
          %885 = vst [vmem:[#allocation2 + $0x58] sm:$0xff] %v869
          %886 = vst [vmem:[#allocation2 + $0x60] sm:$0xff] %v870
          %887 = vst [vmem:[#allocation2 + $0x68] sm:$0xff] %v871
          %888 = vst [vmem:[#allocation2 + $0x70] sm:$0xff] %v872
          %889 = vst [vmem:[#allocation2 + $0x78] sm:$0xff] %v873
        $region60: #{tpu_custom_call.1} parent=39 // pred_fallthru
          _
        %v890 = vld [vmem:[#allocation2] sm:$0xff]
        %v891 = vld [vmem:[#allocation2 + $0x8] sm:$0xff]
        %v892 = vld [vmem:[#allocation2 + $0x10] sm:$0xff]
        %v893 = vld [vmem:[#allocation2 + $0x18] sm:$0xff]
        %v894 = vld [vmem:[#allocation2 + $0x20] sm:$0xff]
        %v895 = vld [vmem:[#allocation2 + $0x28] sm:$0xff]
        %v896 = vld [vmem:[#allocation2 + $0x30] sm:$0xff]
        %v897 = vld [vmem:[#allocation2 + $0x38] sm:$0xff]
        %v898 = vld [vmem:[#allocation2 + $0x40] sm:$0xff]
        %v899 = vld [vmem:[#allocation2 + $0x48] sm:$0xff]
        %v900 = vld [vmem:[#allocation2 + $0x50] sm:$0xff]
        %v901 = vld [vmem:[#allocation2 + $0x58] sm:$0xff]
        %v902 = vld [vmem:[#allocation2 + $0x60] sm:$0xff]
        %v903 = vld [vmem:[#allocation2 + $0x68] sm:$0xff]
        %v904 = vld [vmem:[#allocation2 + $0x70] sm:$0xff]
        %v905 = vld [vmem:[#allocation2 + $0x78] sm:$0xff]
        %v906 = vld [vmem:[%s305] sm:$0xf]
        %v907 = vld [vmem:[%s305 + $0x4] sm:$0xf]
        %v908 = vld [vmem:[%s305 + $0x8] sm:$0xf]
        %v909 = vld [vmem:[%s305 + $0xc] sm:$0xf]
        %v910 = vld [vmem:[%s305 + $0x10] sm:$0xf]
        %v911 = vld [vmem:[%s305 + $0x14] sm:$0xf]
        %v912 = vld [vmem:[%s305 + $0x18] sm:$0xf]
        %v913 = vld [vmem:[%s305 + $0x1c] sm:$0xf]
        %v914 = vld [vmem:[%s305 + $0x20] sm:$0xf]
        %v915 = vld [vmem:[%s305 + $0x24] sm:$0xf]
        %v916 = vld [vmem:[%s305 + $0x28] sm:$0xf]
        %v917 = vld [vmem:[%s305 + $0x2c] sm:$0xf]
        %v918 = vld [vmem:[%s305 + $0x30] sm:$0xf]
        %v919 = vld [vmem:[%s305 + $0x34] sm:$0xf]
        %v920 = vld [vmem:[%s305 + $0x38] sm:$0xf]
        %v921 = vld [vmem:[%s305 + $0x3c] sm:$0xf]
        %v922 = vld [vmem:[%s305 + $0x40] sm:$0xf]
        %v923 = vld [vmem:[%s305 + $0x44] sm:$0xf]
        %v924 = vld [vmem:[%s305 + $0x48] sm:$0xf]
        %v925 = vld [vmem:[%s305 + $0x4c] sm:$0xf]
        %v926 = vld [vmem:[%s305 + $0x50] sm:$0xf]
        %v927 = vld [vmem:[%s305 + $0x54] sm:$0xf]
        %v928 = vld [vmem:[%s305 + $0x58] sm:$0xf]
        %v929 = vld [vmem:[%s305 + $0x5c] sm:$0xf]
        %v930 = vld [vmem:[%s305 + $0x60] sm:$0xf]
        %v931 = vld [vmem:[%s305 + $0x64] sm:$0xf]
        %v932 = vld [vmem:[%s305 + $0x68] sm:$0xf]
        %v933 = vld [vmem:[%s305 + $0x6c] sm:$0xf]
        %v934 = vld [vmem:[%s305 + $0x70] sm:$0xf]
        %v935 = vld [vmem:[%s305 + $0x74] sm:$0xf]
        %v936 = vld [vmem:[%s305 + $0x78] sm:$0xf]
        %v937 = vld [vmem:[%s305 + $0x7c] sm:$0xf]
        %v938 = vld [vmem:[%s344] sm:$0x1]
        %v940 = vperm.slane %v938, 0
        %v958 = vunpack.c.l.b16 %v890
        %v959 = vunpack.c.h.b16 %v890
        %v960 = vunpack.c.l.b16 %v891
        %v961 = vunpack.c.h.b16 %v891
        %v962 = vunpack.c.l.b16 %v892
        %v963 = vunpack.c.h.b16 %v892
        %v964 = vunpack.c.l.b16 %v893
        %v965 = vunpack.c.h.b16 %v893
        %v966 = vunpack.c.l.b16 %v894
        %v967 = vunpack.c.h.b16 %v894
        %v968 = vunpack.c.l.b16 %v895
        %v969 = vunpack.c.h.b16 %v895
        %v970 = vunpack.c.l.b16 %v896
        %v971 = vunpack.c.h.b16 %v896
        %v972 = vunpack.c.l.b16 %v897
        %v973 = vunpack.c.h.b16 %v897
        %v974 = vunpack.c.l.b16 %v898
        %v975 = vunpack.c.h.b16 %v898
        %v976 = vunpack.c.l.b16 %v899
        %v977 = vunpack.c.h.b16 %v899
        %v978 = vunpack.c.l.b16 %v900
        %v979 = vunpack.c.h.b16 %v900
        %v980 = vunpack.c.l.b16 %v901
        %v981 = vunpack.c.h.b16 %v901
        %v982 = vunpack.c.l.b16 %v902
        %v983 = vunpack.c.h.b16 %v902
        %v984 = vunpack.c.l.b16 %v903
        %v985 = vunpack.c.h.b16 %v903
        %v986 = vunpack.c.l.b16 %v904
        %v987 = vunpack.c.h.b16 %v904
        %v988 = vunpack.c.l.b16 %v905
        %v989 = vunpack.c.h.b16 %v905
        %v990 = vpack.c.b16 %v960, %v958
        %v991 = vpack.c.b16 %v961, %v959
        %v992 = vpack.c.b16 %v964, %v962
        %v993 = vpack.c.b16 %v965, %v963
        %v994 = vpack.c.b16 %v968, %v966
        %v995 = vpack.c.b16 %v969, %v967
        %v996 = vpack.c.b16 %v972, %v970
        %v997 = vpack.c.b16 %v973, %v971
        %v998 = vpack.c.b16 %v976, %v974
        %v999 = vpack.c.b16 %v977, %v975
        %v1000 = vpack.c.b16 %v980, %v978
        %v1001 = vpack.c.b16 %v981, %v979
        %v1002 = vpack.c.b16 %v984, %v982
        %v1003 = vpack.c.b16 %v985, %v983
        %v1004 = vpack.c.b16 %v988, %v986
        %v1005 = vpack.c.b16 %v989, %v987
        %v1054 = vunpack.c.l.b16 %v906
        %v1055 = vunpack.c.l.b16 %v907
        %v1056 = vunpack.c.l.b16 %v908
        %v1057 = vunpack.c.l.b16 %v909
        %v1058 = vunpack.c.l.b16 %v910
        %v1059 = vunpack.c.l.b16 %v911
        %v1060 = vunpack.c.l.b16 %v912
        %v1061 = vunpack.c.l.b16 %v913
        %v1062 = vunpack.c.l.b16 %v914
        %v1063 = vunpack.c.l.b16 %v915
        %v1064 = vunpack.c.l.b16 %v916
        %v1065 = vunpack.c.l.b16 %v917
        %v1066 = vunpack.c.l.b16 %v918
        %v1067 = vunpack.c.l.b16 %v919
        %v1068 = vunpack.c.l.b16 %v920
        %v1069 = vunpack.c.l.b16 %v921
        %v1070 = vunpack.c.l.b16 %v922
        %v1071 = vunpack.c.l.b16 %v923
        %v1072 = vunpack.c.l.b16 %v924
        %v1073 = vunpack.c.l.b16 %v925
        %v1074 = vunpack.c.l.b16 %v926
        %v1075 = vunpack.c.l.b16 %v927
        %v1076 = vunpack.c.l.b16 %v928
        %v1077 = vunpack.c.l.b16 %v929
        %v1078 = vunpack.c.l.b16 %v930
        %v1079 = vunpack.c.l.b16 %v931
        %v1080 = vunpack.c.l.b16 %v932
        %v1081 = vunpack.c.l.b16 %v933
        %v1082 = vunpack.c.l.b16 %v934
        %v1083 = vunpack.c.l.b16 %v935
        %v1084 = vunpack.c.l.b16 %v936
        %v1085 = vunpack.c.l.b16 %v937
        %v1086 = vpack.c.b16 %v1055, %v1054
        %v1087 = vpack.c.b16 %v1057, %v1056
        %v1088 = vpack.c.b16 %v1059, %v1058
        %v1089 = vpack.c.b16 %v1061, %v1060
        %v1090 = vpack.c.b16 %v1063, %v1062
        %v1091 = vpack.c.b16 %v1065, %v1064
        %v1092 = vpack.c.b16 %v1067, %v1066
        %v1093 = vpack.c.b16 %v1069, %v1068
        %v1094 = vpack.c.b16 %v1071, %v1070
        %v1095 = vpack.c.b16 %v1073, %v1072
        %v1096 = vpack.c.b16 %v1075, %v1074
        %v1097 = vpack.c.b16 %v1077, %v1076
        %v1098 = vpack.c.b16 %v1079, %v1078
        %v1099 = vpack.c.b16 %v1081, %v1080
        %v1100 = vpack.c.b16 %v1083, %v1082
        %v1101 = vpack.c.b16 %v1085, %v1084
        %1118 = vmatpush.bf16.msra.mxu0 %v1093
        %1119 = vmatpush.bf16.msra.mxu0 %v1092
        %1120 = vmatpush.bf16.msra.mxu0 %v1091
        %1121 = vmatpush.bf16.msra.mxu0 %v1090
        %1122 = vmatpush.bf16.msra.mxu0 %v1089
        %1123 = vmatpush.bf16.msra.mxu0 %v1088
        %1124 = vmatpush.bf16.msra.mxu0 %v1087
        %1125 = vmatpush.bf16.msra.mxu0 %v1086
        %1126 = vmatmul.bf16.gmra.mxu0 %v990
        %v1127 = vpop.f32.mrf.mxu0
        %v1128 = vadd.f32 %v940, %v1127
        %v1129 = vpop.f32.mrf.mxu0
        %v1130 = vadd.f32 %v940, %v1129
        %1131 = vmatmul.bf16.gmra.mxu0 %v992
        %v1132 = vpop.f32.mrf.mxu0
        %v1133 = vadd.f32 %v940, %v1132
        %v1134 = vpop.f32.mrf.mxu0
        %v1135 = vadd.f32 %v940, %v1134
        %1136 = vmatmul.bf16.gmra.mxu0 %v994
        %v1137 = vpop.f32.mrf.mxu0
        %v1138 = vadd.f32 %v940, %v1137
        %v1139 = vpop.f32.mrf.mxu0
        %v1140 = vadd.f32 %v940, %v1139
        %1141 = vmatmul.bf16.gmra.mxu0 %v996
        %v1142 = vpop.f32.mrf.mxu0
        %v1143 = vadd.f32 %v940, %v1142
        %v1144 = vpop.f32.mrf.mxu0
        %v1145 = vadd.f32 %v940, %v1144
        %1146 = vmatmul.bf16.gmra.mxu0 %v998
        %v1147 = vpop.f32.mrf.mxu0
        %v1148 = vadd.f32 %v940, %v1147
        %v1149 = vpop.f32.mrf.mxu0
        %v1150 = vadd.f32 %v940, %v1149
        %1151 = vmatmul.bf16.gmra.mxu0 %v1000
        %v1152 = vpop.f32.mrf.mxu0
        %v1153 = vadd.f32 %v940, %v1152
        %v1154 = vpop.f32.mrf.mxu0
        %v1155 = vadd.f32 %v940, %v1154
        %1156 = vmatmul.bf16.gmra.mxu0 %v1002
        %v1157 = vpop.f32.mrf.mxu0
        %v1158 = vadd.f32 %v940, %v1157
        %v1159 = vpop.f32.mrf.mxu0
        %v1160 = vadd.f32 %v940, %v1159
        %1161 = vmatmul.bf16.gmra.mxu0 %v1004
        %v1162 = vpop.f32.mrf.mxu0
        %v1163 = vadd.f32 %v940, %v1162
        %v1164 = vpop.f32.mrf.mxu0
        %v1165 = vadd.f32 %v940, %v1164
        %1166 = vdwg.mxu0
        %1167 = vmatpush.bf16.msra.mxu0 %v1101
        %1168 = vmatpush.bf16.msra.mxu0 %v1100
        %1169 = vmatpush.bf16.msra.mxu0 %v1099
        %1170 = vmatpush.bf16.msra.mxu0 %v1098
        %1171 = vmatpush.bf16.msra.mxu0 %v1097
        %1172 = vmatpush.bf16.msra.mxu0 %v1096
        %1173 = vmatpush.bf16.msra.mxu0 %v1095
        %1174 = vmatpush.bf16.msra.mxu0 %v1094
        %1175 = vmatmul.bf16.gmra.mxu0 %v991
        %v1176 = vpop.f32.mrf.mxu0
        %v1177 = vadd.f32 %v1128, %v1176
        %v1178 = vpop.f32.mrf.mxu0
        %v1179 = vadd.f32 %v1130, %v1178
        %1180 = vmatmul.bf16.gmra.mxu0 %v993
        %v1181 = vpop.f32.mrf.mxu0
        %v1182 = vadd.f32 %v1133, %v1181
        %v1183 = vpop.f32.mrf.mxu0
        %v1184 = vadd.f32 %v1135, %v1183
        %1185 = vmatmul.bf16.gmra.mxu0 %v995
        %v1186 = vpop.f32.mrf.mxu0
        %v1187 = vadd.f32 %v1138, %v1186
        %v1188 = vpop.f32.mrf.mxu0
        %v1189 = vadd.f32 %v1140, %v1188
        %1190 = vmatmul.bf16.gmra.mxu0 %v997
        %v1191 = vpop.f32.mrf.mxu0
        %v1192 = vadd.f32 %v1143, %v1191
        %v1193 = vpop.f32.mrf.mxu0
        %v1194 = vadd.f32 %v1145, %v1193
        %1195 = vmatmul.bf16.gmra.mxu0 %v999
        %v1196 = vpop.f32.mrf.mxu0
        %v1197 = vadd.f32 %v1148, %v1196
        %v1198 = vpop.f32.mrf.mxu0
        %v1199 = vadd.f32 %v1150, %v1198
        %1200 = vmatmul.bf16.gmra.mxu0 %v1001
        %v1201 = vpop.f32.mrf.mxu0
        %v1202 = vadd.f32 %v1153, %v1201
        %v1203 = vpop.f32.mrf.mxu0
        %v1204 = vadd.f32 %v1155, %v1203
        %1205 = vmatmul.bf16.gmra.mxu0 %v1003
        %v1206 = vpop.f32.mrf.mxu0
        %v1207 = vadd.f32 %v1158, %v1206
        %v1208 = vpop.f32.mrf.mxu0
        %v1209 = vadd.f32 %v1160, %v1208
        %1210 = vmatmul.bf16.gmra.mxu0 %v1005
        %v1211 = vpop.f32.mrf.mxu0
        %v1212 = vadd.f32 %v1163, %v1211
        %v1213 = vpop.f32.mrf.mxu0
        %v1214 = vadd.f32 %v1165, %v1213
        %1215 = vdwg.mxu0
        %1216 = vst [vmem:[%s340] sm:$0xff] %v1177
        %1217 = vst [vmem:[%s340 + $0x8] sm:$0xff] %v1179
        %1218 = vst [vmem:[%s340 + $0x10] sm:$0xff] %v1182
        %1219 = vst [vmem:[%s340 + $0x18] sm:$0xff] %v1184
        %1220 = vst [vmem:[%s340 + $0x20] sm:$0xff] %v1187
        %1221 = vst [vmem:[%s340 + $0x28] sm:$0xff] %v1189
        %1222 = vst [vmem:[%s340 + $0x30] sm:$0xff] %v1192
        %1223 = vst [vmem:[%s340 + $0x38] sm:$0xff] %v1194
        %1224 = vst [vmem:[%s340 + $0x40] sm:$0xff] %v1197
        %1225 = vst [vmem:[%s340 + $0x48] sm:$0xff] %v1199
        %1226 = vst [vmem:[%s340 + $0x50] sm:$0xff] %v1202
        %1227 = vst [vmem:[%s340 + $0x58] sm:$0xff] %v1204
        %1228 = vst [vmem:[%s340 + $0x60] sm:$0xff] %v1207
        %1229 = vst [vmem:[%s340 + $0x68] sm:$0xff] %v1209
        %1230 = vst [vmem:[%s340 + $0x70] sm:$0xff] %v1212
        %1231 = vst [vmem:[%s340 + $0x78] sm:$0xff] %v1214
        %s1232 = sand.u32 %s168, 1
        %s1233 = scalar_lea.sflag [#allocation5], %s1232
        %s1234 = sand.u32 %s168, 1
        %s1235 = smul.addr %s1234, 128
        %s1236 = scalar_lea.vmem [#allocation11], %s1235
        // Predicated region
        $region61: #{tpu_custom_call.1} parent=39 // pred_check
          %p1237 = pneg %p178
        $region62: #{tpu_custom_call.1} parent=39 // pred_check_branch
          %1239 = sbr.rel (%p1237) target = $region64
        $region63: #{tpu_custom_call.1} parent=39 // pred_region
          %s1240 = smul.u32 16, %s30
          %1242 = vsyncadd %s1233, 0
          %s1243 = smul.addr %s1240, 2
          %s1244 = sadd.s32 %s31, %s1243
          %s1245 = smul.addr %s1244, 8
          %s1246 = scalar_lea.hbm %s5, %s1245
          %s1247 = sshll.u32 %s1236, 4
          %s1248 = int_to_ptr.vmem [resolvable:$true] %s1247
          %s1249 = sshll.u32 %s1246, 4
          %s1250 = int_to_ptr.hbm [resolvable:$true] %s1249
          %1255 = dma.vmem_to_hbm [thread:$0]  %s1248, 2048, %s1250, %s1233, 128, 256, 8
        $region64: #{tpu_custom_call.1} parent=39 // pred_fallthru
          _
      $region40: #{tpu_custom_call.1} parent=5 // pred_fallthru
        _
      %p1256 = scmp.le.s32.totalorder 2, %s21
      // Predicated region
      $region65: #{tpu_custom_call.1} parent=5 // pred_check
        %p1257 = pneg %p1256
      $region66: #{tpu_custom_call.1} parent=5 // pred_check_branch
        %1259 = sbr.rel (%p1257) target = $region68
      $region67: #{tpu_custom_call.1} parent=5 // pred_region
        %s1260 = ssub.s32 %s21, 2
        // Predicated region
        $region69: #{tpu_custom_call.1} parent=67 // pred_check
          %p1261 = pneg %p184
        $region70: #{tpu_custom_call.1} parent=67 // pred_check_branch
          %1263 = sbr.rel (%p1261) target = $region72
        $region71: #{tpu_custom_call.1} parent=67 // pred_region
          %s1264 = sand.u32 %s169, 1
          %s1265 = scalar_lea.sflag [#allocation5], %s1264
          %s1266 = sand.u32 %s169, 1
          %s1267 = smul.addr %s1266, 128
          %s1268 = scalar_lea.vmem [#allocation11], %s1267
          %1270 = dma.done %s1265, 2048
        $region72: #{tpu_custom_call.1} parent=67 // pred_fallthru
          _
      $region68: #{tpu_custom_call.1} parent=5 // pred_fallthru
        _
    $region6: #{tpu_custom_call.1} parent=1 // loop_footer
      %s25 = sadd.s32 1, %s21
    $region7: #{tpu_custom_call.1} parent=1 // loop_footer_branch
      %20 = sbr.rel target = $region3
    $region8: #{tpu_custom_call.1} parent=1 // loop_exit
      _
    %1271 = vsyncpa [#allocation4], 1
    %s1272 = scalar_lea.sflag [#allocation4], 1
    %1273 = vsyncpa %s1272, 1
    %1274 = vsyncpa [#allocation7], 1
    %1275 = vsyncpa [#allocation10], 1
    %s1276 = scalar_lea.sflag [#allocation10], 1
    %1277 = vsyncpa %s1276, 1
    %1278 = vsyncpa [#allocation5], 1
    %s1279 = scalar_lea.sflag [#allocation5], 1
    %1280 = vsyncpa %s1279, 1

</llo_original>
